<compile_context>
chip_gen: v6e
topology: v6e:2x2x1
jax: 0.10.0
libtpu: 0.0.40
codegen_flags: <defaults>
</compile_context>

<pallas_src>
import math

import jax
import jax.numpy as jnp
from jax.experimental import pallas as pl
from jax.experimental.pallas import tpu as pltpu


def _make_kernel(hw_valid, tile, needs_mask):
    """Kernel factory: tile / padding info is compile-time (closure) constant."""

    def kernel(scal_ref, x0_ref, eps_ref, w1t_ref, bias1_ref, w2t_ref, b2t_ref,
               pred_ref, sse_ref):
        # scal_ref : SMEM (B, 2) -> [sqrt(alpha_bar), sqrt(1-alpha_bar)] per batch
        # x0/eps   : (1, C, tile) bf16, channels-first, spatial on lanes
        # w1t      : (hidden, C), bias1: (1, hidden, 1), w2t: (C, hidden), b2t: (C, 1)
        b = pl.program_id(0)
        sab = scal_ref[b, 0]
        s1ab = scal_ref[b, 1]

        # bf16 HBM streams -> f32 immediately (v5e VPU has no native bf16 ALU).
        x0 = x0_ref[0].astype(jnp.float32)       # (C, tile)
        eps = eps_ref[0].astype(jnp.float32)     # (C, tile)

        # Forward diffusion (noising), elementwise on the VPU.
        xt = sab * x0 + s1ab * eps

        # Tiny pointwise denoiser: Linear -> (+bias+time-emb) -> ReLU -> Linear,
        # channels-first so the big spatial dim stays on the lane axis.
        h = jnp.dot(w1t_ref[...], xt, preferred_element_type=jnp.float32)    # (hidden, tile)
        h = jnp.maximum(h + bias1_ref[0], 0.0)                               # bias bcast over lanes
        pred = jnp.dot(w2t_ref[...], h, preferred_element_type=jnp.float32)  # (C, tile)
        pred = pred + b2t_ref[...]

        pred_ref[0] = pred.astype(pred_ref.dtype)                            # bf16 store

        # In-kernel SSE reduction (f32): sublane reduce over C, then XLU lane
        # reduce to a single scalar per (batch, tile). Only 4 bytes go to HBM.
        diff = pred - eps
        d2row = jnp.sum(diff * diff, axis=0, keepdims=True)                  # (1, tile)
        if needs_mask:
            pos = (pl.program_id(1) * tile
                   + jax.lax.broadcasted_iota(jnp.int32, (1, tile), 1))
            d2row = jnp.where(pos < hw_valid, d2row, 0.0)                    # ragged tail -> 0
        sse_ref[0, 0] = jnp.sum(d2row, axis=1, keepdims=True)                # (1, 1)

    return kernel


def _pick_tile(hw, cap):
    """Return (tile, hw_padded). Never exceeds the cap: if HW has no
    multiple-of-128 divisor <= cap, pad HW up and mask the tail in-kernel."""
    cap128 = max(128, (cap // 128) * 128)
    if hw <= cap:
        return hw, hw                      # full-extent block (no 128 constraint)
    t = cap128
    while t >= 128:
        if hw % t == 0:
            return t, hw
        t -= 128
    hw_pad = ((hw + cap128 - 1) // cap128) * cap128
    return cap128, hw_pad


def diffusion_forward(x0_nchw, eps_nchw, sqrt_ab, sqrt_1m_ab, t_emb,
                      w1, b1, w2, b2, *, max_tile_hw=65536):
    """x0_nchw, eps_nchw: [B, C, H, W]. Returns (loss_scalar_f32, eps_pred_nchw_bf16)."""
    B, C, H, W = x0_nchw.shape
    HW = H * W
    hidden = w1.shape[1]

    tile, hw_pad = _pick_tile(HW, max_tile_hw)
    n_tiles = hw_pad // tile
    needs_mask = hw_pad != HW

    # Channels-first flattened layout: pure reshape (no transpose HBM pass),
    # bf16 halves the HBM bytes of the three large streams.
    x0 = x0_nchw.reshape(B, C, HW).astype(jnp.bfloat16)
    eps = eps_nchw.reshape(B, C, HW).astype(jnp.bfloat16)
    if needs_mask:
        pad = hw_pad - HW
        x0 = jnp.pad(x0, ((0, 0), (0, 0), (0, pad)))
        eps = jnp.pad(eps, ((0, 0), (0, 0), (0, pad)))

    # Per-batch scalars packed for SMEM.
    scal = jnp.stack([sqrt_ab, sqrt_1m_ab], axis=-1).astype(jnp.float32)       # (B, 2)

    # Transposed weights for channels-first matmuls; fold b1 + t_emb once here.
    w1t = jnp.transpose(w1).astype(jnp.float32)                                # (hidden, C)
    w2t = jnp.transpose(w2).astype(jnp.float32)                                # (C, hidden)
    bias1 = (t_emb.reshape(B, hidden)
             + b1.reshape(1, hidden)).astype(jnp.float32)[:, :, None]          # (B, hidden, 1)
    b2t = jnp.transpose(b2.reshape(1, C)).astype(jnp.float32)                  # (C, 1)

    kernel = _make_kernel(HW, tile, needs_mask)

    pred, sse = pl.pallas_call(
        kernel,
        grid=(B, n_tiles),
        in_specs=[
            pl.BlockSpec(memory_space=pltpu.MemorySpace.SMEM),                 # (B, 2) scalars
            pl.BlockSpec((1, C, tile), lambda b, i: (b, 0, i)),                # x0 (bf16)
            pl.BlockSpec((1, C, tile), lambda b, i: (b, 0, i)),                # eps (bf16)
            pl.BlockSpec((hidden, C), lambda b, i: (0, 0)),                    # w1^T (resident)
            pl.BlockSpec((1, hidden, 1), lambda b, i: (b, 0, 0)),              # b1 + t_emb
            pl.BlockSpec((C, hidden), lambda b, i: (0, 0)),                    # w2^T (resident)
            pl.BlockSpec((C, 1), lambda b, i: (0, 0)),                         # b2^T
        ],
        out_specs=[
            pl.BlockSpec((1, C, tile), lambda b, i: (b, 0, i)),                # eps_pred (bf16)
            pl.BlockSpec((1, 1, 1, 1), lambda b, i: (b, i, 0, 0)),             # per-tile SSE (f32)
        ],
        out_shape=[
            jax.ShapeDtypeStruct((B, C, hw_pad), jnp.bfloat16),
            jax.ShapeDtypeStruct((B, n_tiles, 1, 1), jnp.float32),
        ],
        compiler_params=pltpu.CompilerParams(
            dimension_semantics=("parallel", "parallel"),
            vmem_limit_bytes=32 * 1024 * 1024),
    )(scal, x0, eps, w1t, bias1, w2t, b2t)

    loss = jnp.sum(sse) / (B * HW * C)
    pred_nchw = pred[:, :, :HW].reshape(B, C, H, W)        # drop pad, reshape back to NCHW
    return loss, pred_nchw


def sinusoidal_time_embedding(t, dim):
    half = dim // 2
    freqs = jnp.exp(-math.log(10000.0) * jnp.arange(half, dtype=jnp.float32) / half)
    args = t.astype(jnp.float32)[:, None] * freqs[None, :]
    return jnp.concatenate([jnp.sin(args), jnp.cos(args)], axis=-1)   # (B, dim)


if __name__ == "__main__":
    B, C, H, W = 2, 4, 16, 16
    hidden = 32
    T_STEPS = 100

    key = jax.random.PRNGKey(0)
    k_x0, k_eps, k_t, k_w1, k_b1, k_w2, k_b2 = jax.random.split(key, 7)

    # Inputs (NCHW like PyTorch)
    x0 = jax.random.normal(k_x0, (B, C, H, W), dtype=jnp.float32)
    eps = jax.random.normal(k_eps, (B, C, H, W), dtype=jnp.float32)
    t = jax.random.randint(k_t, (B,), 0, T_STEPS)

    # DDPM noise schedule (linear betas)
    betas = jnp.linspace(1e-4, 0.02, T_STEPS, dtype=jnp.float32)
    alpha_bar = jnp.cumprod(1.0 - betas)
    sqrt_ab = jnp.sqrt(alpha_bar[t])
    sqrt_1m_ab = jnp.sqrt(1.0 - alpha_bar[t])

    # Deterministic denoiser parameters
    w1 = 0.1 * jax.random.normal(k_w1, (C, hidden), dtype=jnp.float32)
    b1 = 0.01 * jax.random.normal(k_b1, (1, hidden), dtype=jnp.float32)
    w2 = 0.1 * jax.random.normal(k_w2, (hidden, C), dtype=jnp.float32)
    b2 = 0.01 * jax.random.normal(k_b2, (1, C), dtype=jnp.float32)

    t_emb = sinusoidal_time_embedding(t, hidden)

    fwd = jax.jit(diffusion_forward)
    loss, eps_pred = fwd(x0, eps, sqrt_ab, sqrt_1m_ab, t_emb, w1, b1, w2, b2)
    jax.block_until_ready((loss, eps_pred))

    # Reference uses the same bf16-rounded inputs (bf16 I/O is a deliberate perf
    # choice); in-kernel math and SSE are f32, so only the bf16 store of eps_pred
    # and MXU accumulation order differ.
    HW = H * W
    x0q = x0.astype(jnp.bfloat16).astype(jnp.float32)
    epsq = eps.astype(jnp.bfloat16).astype(jnp.float32)
    x0_l = jnp.transpose(x0q, (0, 2, 3, 1)).reshape(B, HW, C)
    eps_l = jnp.transpose(epsq, (0, 2, 3, 1)).reshape(B, HW, C)
    xt = sqrt_ab[:, None, None] * x0_l + sqrt_1m_ab[:, None, None] * eps_l
    h_ref = jnp.maximum(xt @ w1 + b1 + t_emb[:, None, :], 0.0)
    pred_l = h_ref @ w2 + b2
    loss_ref = jnp.mean((pred_l - eps_l) ** 2)
    pred_ref_nchw = jnp.transpose(pred_l.reshape(B, H, W, C), (0, 3, 1, 2))

    assert jnp.allclose(loss, loss_ref, rtol=1e-4, atol=1e-4)
    assert jnp.allclose(eps_pred.astype(jnp.float32), pred_ref_nchw, rtol=1e-2, atol=1e-2)

    print("KERNEL_OK")
</pallas_src>

<mosaic_0001>
module attributes {stable_mosaic.version = 11 : i64} {
  func.func @kernel(%arg0: i32, %arg1: i32, %arg2: memref<2x2xf32, #tpu.memory_space<smem>>, %arg3: memref<1x4x256xbf16, #tpu.memory_space<vmem>>, %arg4: memref<1x4x256xbf16, #tpu.memory_space<vmem>>, %arg5: memref<32x4xf32, #tpu.memory_space<vmem>>, %arg6: memref<1x32x1xf32, #tpu.memory_space<vmem>>, %arg7: memref<4x32xf32, #tpu.memory_space<vmem>>, %arg8: memref<4x1xf32, #tpu.memory_space<vmem>>, %arg9: memref<1x4x256xbf16, #tpu.memory_space<vmem>>, %arg10: memref<1x1x1x1xf32, #tpu.memory_space<vmem>>) attributes {dimension_semantics = [#tpu.dimension_semantics<parallel>, #tpu.dimension_semantics<parallel>], iteration_bounds = array<i64: 2, 1>, scalar_prefetch = 0 : i64, scratch_operands = 0 : i64, tpu.core_type = #tpu.core_type<tc>, window_params = [{transform_indices = @transform_0, window_bounds = array<i64: 2, 2>}, {transform_indices = @transform_1, window_bounds = array<i64: 1, 4, 256>}, {transform_indices = @transform_2, window_bounds = array<i64: 1, 4, 256>}, {pipeline_mode = #tpu.pipeline_mode<synchronous>, transform_indices = @transform_3, window_bounds = array<i64: 32, 4>}, {transform_indices = @transform_4, window_bounds = array<i64: 1, 32, 1>}, {pipeline_mode = #tpu.pipeline_mode<synchronous>, transform_indices = @transform_5, window_bounds = array<i64: 4, 32>}, {pipeline_mode = #tpu.pipeline_mode<synchronous>, transform_indices = @transform_6, window_bounds = array<i64: 4, 1>}, {transform_indices = @transform_7, window_bounds = array<i64: 1, 4, 256>}, {transform_indices = @transform_8, window_bounds = array<i64: 1, 1, 1, 1>}]} {
    %0 = arith.index_cast %arg0 : i32 to index
    %c0 = arith.constant 0 : index
    %1 = memref.load %arg2[%0, %c0] : memref<2x2xf32, #tpu.memory_space<smem>>
    %2 = arith.index_cast %arg0 : i32 to index
    %c1 = arith.constant 1 : index
    %3 = memref.load %arg2[%2, %c1] : memref<2x2xf32, #tpu.memory_space<smem>>
    %c0_0 = arith.constant 0 : index
    %c0_1 = arith.constant 0 : index
    %c0_2 = arith.constant 0 : index
    %4 = vector.load %arg3[%c0_0, %c0_1, %c0_2] : memref<1x4x256xbf16, #tpu.memory_space<vmem>>, vector<1x4x256xbf16>
    %5 = vector.shape_cast %4 : vector<1x4x256xbf16> to vector<4x256xbf16>
    %6 = arith.extf %5 : vector<4x256xbf16> to vector<4x256xf32>
    %c0_3 = arith.constant 0 : index
    %c0_4 = arith.constant 0 : index
    %c0_5 = arith.constant 0 : index
    %7 = vector.load %arg4[%c0_3, %c0_4, %c0_5] : memref<1x4x256xbf16, #tpu.memory_space<vmem>>, vector<1x4x256xbf16>
    %8 = vector.shape_cast %7 : vector<1x4x256xbf16> to vector<4x256xbf16>
    %9 = arith.extf %8 : vector<4x256xbf16> to vector<4x256xf32>
    %10 = vector.broadcast %1 : f32 to vector<4x256xf32>
    %11 = arith.mulf %10, %6 : vector<4x256xf32>
    %12 = vector.broadcast %3 : f32 to vector<4x256xf32>
    %13 = arith.mulf %12, %9 : vector<4x256xf32>
    %14 = arith.addf %11, %13 : vector<4x256xf32>
    %c0_6 = arith.constant 0 : index
    %c0_7 = arith.constant 0 : index
    %15 = vector.load %arg5[%c0_6, %c0_7] : memref<32x4xf32, #tpu.memory_space<vmem>>, vector<32x4xf32>
    %cst = arith.constant dense<0.000000e+00> : vector<32x256xf32>
    %16 = tpu.matmul %15, %14, %cst {dimension_numbers = #tpu.dot_dimension_numbers<[1], [0], [0], [1], [0, 0, 1, 1], [], []>} : vector<32x4xf32>, vector<4x256xf32>, vector<32x256xf32> -> vector<32x256xf32>
    %c0_8 = arith.constant 0 : index
    %c0_9 = arith.constant 0 : index
    %c0_10 = arith.constant 0 : index
    %17 = vector.load %arg6[%c0_8, %c0_9, %c0_10] : memref<1x32x1xf32, #tpu.memory_space<vmem>>, vector<1x32x1xf32>
    %18 = vector.shape_cast %17 : vector<1x32x1xf32> to vector<32x1xf32>
    %19 = vector.broadcast %18 : vector<32x1xf32> to vector<32x256xf32>
    %20 = arith.addf %16, %19 : vector<32x256xf32>
    %cst_11 = arith.constant 0.000000e+00 : f32
    %21 = vector.broadcast %cst_11 : f32 to vector<32x256xf32>
    %22 = arith.maximumf %20, %21 : vector<32x256xf32>
    %c0_12 = arith.constant 0 : index
    %c0_13 = arith.constant 0 : index
    %23 = vector.load %arg7[%c0_12, %c0_13] : memref<4x32xf32, #tpu.memory_space<vmem>>, vector<4x32xf32>
    %cst_14 = arith.constant dense<0.000000e+00> : vector<4x256xf32>
    %24 = tpu.matmul %23, %22, %cst_14 {dimension_numbers = #tpu.dot_dimension_numbers<[1], [0], [0], [1], [0, 0, 1, 1], [], []>} : vector<4x32xf32>, vector<32x256xf32>, vector<4x256xf32> -> vector<4x256xf32>
    %c0_15 = arith.constant 0 : index
    %c0_16 = arith.constant 0 : index
    %25 = vector.load %arg8[%c0_15, %c0_16] : memref<4x1xf32, #tpu.memory_space<vmem>>, vector<4x1xf32>
    %26 = vector.broadcast %25 : vector<4x1xf32> to vector<4x256xf32>
    %27 = arith.addf %24, %26 : vector<4x256xf32>
    %28 = arith.truncf %27 : vector<4x256xf32> to vector<4x256xbf16>
    %c0_17 = arith.constant 0 : index
    %c0_18 = arith.constant 0 : index
    %c0_19 = arith.constant 0 : index
    %29 = vector.load %arg9[%c0_17, %c0_18, %c0_19] : memref<1x4x256xbf16, #tpu.memory_space<vmem>>, vector<1x4x256xbf16>
    %30 = vector.shape_cast %29 : vector<1x4x256xbf16> to vector<4x256xbf16>
    %31 = vector.shape_cast %28 : vector<4x256xbf16> to vector<1x4x256xbf16>
    tpu.vector_store %arg9[%c0_17, %c0_18, %c0_19], %31 {strides = array<i32>} : memref<1x4x256xbf16, #tpu.memory_space<vmem>>, vector<1x4x256xbf16>,
    %32 = arith.subf %27, %9 : vector<4x256xf32>
    %33 = arith.mulf %32, %32 : vector<4x256xf32>
    %cst_20 = arith.constant dense<0.000000e+00> : vector<256xf32>
    %34 = vector.multi_reduction <add>, %33, %cst_20 [0] : vector<4x256xf32> to vector<256xf32>
    %35 = vector.shape_cast %34 : vector<256xf32> to vector<1x256xf32>
    %cst_21 = arith.constant dense<0.000000e+00> : vector<1xf32>
    %36 = vector.multi_reduction <add>, %35, %cst_21 [1] : vector<1x256xf32> to vector<1xf32>
    %37 = vector.shape_cast %36 : vector<1xf32> to vector<1x1xf32>
    %c0_22 = arith.constant 0 : index
    %c0_23 = arith.constant 0 : index
    %c0_24 = arith.constant 0 : index
    %c0_25 = arith.constant 0 : index
    %38 = vector.load %arg10[%c0_22, %c0_23, %c0_24, %c0_25] : memref<1x1x1x1xf32, #tpu.memory_space<vmem>>, vector<1x1x1x1xf32>
    %39 = vector.shape_cast %38 : vector<1x1x1x1xf32> to vector<1x1xf32>
    %40 = vector.shape_cast %37 : vector<1x1xf32> to vector<1x1x1x1xf32>
    tpu.vector_store %arg10[%c0_22, %c0_23, %c0_24, %c0_25], %40 {strides = array<i32>} : memref<1x1x1x1xf32, #tpu.memory_space<vmem>>, vector<1x1x1x1xf32>,
    return
  }
  func.func @transform_0(%arg0: i32, %arg1: i32) -> (i32, i32) {
    %c0_i32 = arith.constant 0 : i32
    %c0_i32_0 = arith.constant 0 : i32
    %c0_i32_1 = arith.constant 0 : i32
    return %c0_i32, %c0_i32_0 : i32, i32
  }
  func.func @transform_1(%arg0: i32, %arg1: i32) -> (i32, i32, i32) {
    %c0_i32 = arith.constant 0 : i32
    %c0_i32_0 = arith.constant 0 : i32
    return %arg0, %c0_i32, %arg1 : i32, i32, i32
  }
  func.func @transform_2(%arg0: i32, %arg1: i32) -> (i32, i32, i32) {
    %c0_i32 = arith.constant 0 : i32
    %c0_i32_0 = arith.constant 0 : i32
    return %arg0, %c0_i32, %arg1 : i32, i32, i32
  }
  func.func @transform_3(%arg0: i32, %arg1: i32) -> (i32, i32) {
    %c0_i32 = arith.constant 0 : i32
    %c0_i32_0 = arith.constant 0 : i32
    %c0_i32_1 = arith.constant 0 : i32
    return %c0_i32, %c0_i32_0 : i32, i32
  }
  func.func @transform_4(%arg0: i32, %arg1: i32) -> (i32, i32, i32) {
    %c0_i32 = arith.constant 0 : i32
    %c0_i32_0 = arith.constant 0 : i32
    %c0_i32_1 = arith.constant 0 : i32
    return %arg0, %c0_i32, %c0_i32_0 : i32, i32, i32
  }
  func.func @transform_5(%arg0: i32, %arg1: i32) -> (i32, i32) {
    %c0_i32 = arith.constant 0 : i32
    %c0_i32_0 = arith.constant 0 : i32
    %c0_i32_1 = arith.constant 0 : i32
    return %c0_i32, %c0_i32_0 : i32, i32
  }
  func.func @transform_6(%arg0: i32, %arg1: i32) -> (i32, i32) {
    %c0_i32 = arith.constant 0 : i32
    %c0_i32_0 = arith.constant 0 : i32
    %c0_i32_1 = arith.constant 0 : i32
    return %c0_i32, %c0_i32_0 : i32, i32
  }
  func.func @transform_7(%arg0: i32, %arg1: i32) -> (i32, i32, i32) {
    %c0_i32 = arith.constant 0 : i32
    %c0_i32_0 = arith.constant 0 : i32
    return %arg0, %c0_i32, %arg1 : i32, i32, i32
  }
  func.func @transform_8(%arg0: i32, %arg1: i32) -> (i32, i32, i32, i32) {
    %c0_i32 = arith.constant 0 : i32
    %c0_i32_0 = arith.constant 0 : i32
    %c0_i32_1 = arith.constant 0 : i32
    return %arg0, %arg1, %c0_i32, %c0_i32_0 : i32, i32, i32, i32
  }
}

</mosaic_0001>

<llo_original>
// kernel: diffusion_forward.1
$region0: #{diffusion_forward.1}
  #allocation0 [shape = 'u32[]', space=smem, size = 0x4, offset = 0x4, fixed_abs, tag = 'smem constant byte address 0x4 - core index']
  #allocation1 [shape = 'u32[144,128]{1,0:T(1,128)}', space=vmem, size = 0x12000, scoped, tag = 'internal scratch']
  %s0 = inlined_call_operand.vmem [shape: f32[2,2], index: 0, kind: input, shape index: {}]
  %s1 = inlined_call_operand.vmem [shape: bf16[2,4,256], index: 1, kind: input, shape index: {}]
  %s2 = inlined_call_operand.vmem [shape: bf16[2,4,256], index: 2, kind: input, shape index: {}]
  %s3 = inlined_call_operand.vmem [shape: f32[32,4], index: 3, kind: input, shape index: {}]
  %s4 = inlined_call_operand.vmem [shape: f32[2,32,1], index: 4, kind: input, shape index: {}]
  %s5 = inlined_call_operand.vmem [shape: f32[4,32], index: 5, kind: input, shape index: {}]
  %s6 = inlined_call_operand.vmem [shape: f32[4,1], index: 6, kind: input, shape index: {}]
  %s7 = inlined_call_operand.vmem [shape: bf16[2,4,256], index: 7, kind: output, shape index: {0}]
  %s8 = inlined_call_operand.vmem [shape: f32[2,1,1,1], index: 8, kind: output, shape index: {1}]
  %9 = xla_tuple %s7, %s8
  %s10 = sld [smem:[#allocation0]]
  $region73: #{diffusion_forward.1} parent=0
    _
  %s12 = ssub.s32 1, %s10
  %s13 = scalar_select 0, %s12, %s10
  $region1: #{diffusion_forward.1} parent=0
    #allocation2 [shape = 'u8[1024]{0}', space=smem, size = 0x400, scoped, tag = 'input window, operand 0, single buffered']
    #allocation3 [shape = 's32[2]{0}', space=sflag, size = 0x8, scoped, tag = 'scoped memory for diffusion_forward.1']
    %14 = vsyncpa [#allocation3], 0
    loop: start=0, step=1, limit=4
    $region2: #{diffusion_forward.1} parent=1 // loop_pre_header
      _
    $region3: #{diffusion_forward.1} parent=1 // loop_header
      %s16 = sphi 0, %s20
      %p17 = scmp.ge.s32.totalorder %s16, 4
      %s23 = sphi 0, %s35
      %s24 = sphi 0, %s31
      %s25 = sphi 0, %s23
      %s26 = sphi 0, %s24
      %s27 = sphi 0, %s25
      %s28 = sphi 0, %s26
      %s36 = sphi 0, %s36
      %s38 = sphi 0, %s36
      %s39 = sphi 0, %s38
      %s53 = sphi 0, %s39
      %s61 = sphi 0, %s63
      %s64 = sphi 0, %s61
      %s65 = sphi 0, %s64
      %s81 = sphi 0, %s65
      %s89 = sphi 0, %s91
      %s92 = sphi 0, %s89
      %s93 = sphi 0, %s92
      %s109 = sphi 0, %s93
      %s113 = sphi 0, %s113
      %s115 = sphi 0, %s113
      %s116 = sphi 0, %s115
      %s130 = sphi 0, %s116
      %s136 = sphi 0, %s138
      %s139 = sphi 0, %s136
      %s140 = sphi 0, %s139
      %s156 = sphi 0, %s140
      %s160 = sphi 0, %s160
      %s162 = sphi 0, %s160
      %s163 = sphi 0, %s162
      %s177 = sphi 0, %s163
      %s181 = sphi 0, %s181
      %s183 = sphi 0, %s181
      %s184 = sphi 0, %s183
      %s198 = sphi 0, %s184
      %s206 = sphi 0, %s208
      %s209 = sphi 0, %s206
      %s210 = sphi 0, %s209
      %s226 = sphi 0, %s210
      %s234 = sphi 0, %s236
      %s237 = sphi 0, %s234
      %s238 = sphi 0, %s237
      %s254 = sphi 0, %s238
    $region4: #{diffusion_forward.1} parent=1 // loop_header_branch
      %19 = sbr.rel (%p17) target = $region8
    $region5: #{diffusion_forward.1} parent=1 // loop_body
      %s21 = ssub.s32 %s16, 1
      %s22 = ssub.s32 %s16, 2
      %s29 = sadd.s32 1, %s24
      %p30 = scmp.ge.s32.totalorder %s29, 1
      %s31 = scalar_select %p30, 0, %s29
      %s32 = sadd.s32 1, %s23
      %s33 = scalar_select %p30, %s32, %s23
      %p34 = scmp.ge.s32.totalorder %s33, 2
      %s35 = scalar_select %p34, 0, %s33
      %s37 = sadd.s32 %s36, 1
      %p40 = scmp.eq.s32.totalorder %s16, 1
      %p41 = scmp.ne.s32.totalorder %s36, %s38
      %p42 = scmp.eq.s32.totalorder %s16, 0
      %p43 = por %p41, %p42
      %p44 = scmp.ne.s32.totalorder %s36, %s38
      %p45 = scmp.eq.s32.totalorder %s21, 1
      %p46 = por %p44, %p45
      %p47 = scmp.ne.s32.totalorder %s38, %s39
      %p48 = scmp.eq.s32.totalorder %s21, 0
      %p49 = por %p47, %p48
      %p50 = scmp.ne.s32.totalorder %s38, %s39
      %p51 = scmp.eq.s32.totalorder %s22, 1
      %p52 = por %p50, %p51
      %p54 = scmp.ne.s32.totalorder %s39, %s53
      %p55 = scmp.eq.s32.totalorder %s22, 0
      %p56 = por %p54, %p55
      %s57 = ssub.s32 %s23, %s35
      %s58 = ssub.s32 %s24, %s31
      %s59 = sor.u32 %s57, %s58
      %p60 = scmp.eq.s32.totalorder %s59, 0
      %s62 = sadd.s32 %s61, 1
      %s63 = scalar_select %p60, %s61, %s62
      %p66 = pneg %p60
      %p67 = scmp.eq.s32.totalorder %s16, 1
      %p68 = por %p66, %p67
      %p69 = scmp.ne.s32.totalorder %s61, %s64
      %p70 = scmp.eq.s32.totalorder %s16, 0
      %p71 = por %p69, %p70
      %p72 = scmp.ne.s32.totalorder %s61, %s64
      %p73 = scmp.eq.s32.totalorder %s21, 1
      %p74 = por %p72, %p73
      %p75 = scmp.ne.s32.totalorder %s64, %s65
      %p76 = scmp.eq.s32.totalorder %s21, 0
      %p77 = por %p75, %p76
      %p78 = scmp.ne.s32.totalorder %s64, %s65
      %p79 = scmp.eq.s32.totalorder %s22, 1
      %p80 = por %p78, %p79
      %p82 = scmp.ne.s32.totalorder %s65, %s81
      %p83 = scmp.eq.s32.totalorder %s22, 0
      %p84 = por %p82, %p83
      %s85 = ssub.s32 %s23, %s35
      %s86 = ssub.s32 %s24, %s31
      %s87 = sor.u32 %s85, %s86
      %p88 = scmp.eq.s32.totalorder %s87, 0
      %s90 = sadd.s32 %s89, 1
      %s91 = scalar_select %p88, %s89, %s90
      %p94 = pneg %p88
      %p95 = scmp.eq.s32.totalorder %s16, 1
      %p96 = por %p94, %p95
      %p97 = scmp.ne.s32.totalorder %s89, %s92
      %p98 = scmp.eq.s32.totalorder %s16, 0
      %p99 = por %p97, %p98
      %p100 = scmp.ne.s32.totalorder %s89, %s92
      %p101 = scmp.eq.s32.totalorder %s21, 1
      %p102 = por %p100, %p101
      %p103 = scmp.ne.s32.totalorder %s92, %s93
      %p104 = scmp.eq.s32.totalorder %s21, 0
      %p105 = por %p103, %p104
      %p106 = scmp.ne.s32.totalorder %s92, %s93
      %p107 = scmp.eq.s32.totalorder %s22, 1
      %p108 = por %p106, %p107
      %p110 = scmp.ne.s32.totalorder %s93, %s109
      %p111 = scmp.eq.s32.totalorder %s22, 0
      %p112 = por %p110, %p111
      %s114 = sadd.s32 %s113, 1
      %p117 = scmp.eq.s32.totalorder %s16, 1
      %p118 = scmp.ne.s32.totalorder %s113, %s115
      %p119 = scmp.eq.s32.totalorder %s16, 0
      %p120 = por %p118, %p119
      %p121 = scmp.ne.s32.totalorder %s113, %s115
      %p122 = scmp.eq.s32.totalorder %s21, 1
      %p123 = por %p121, %p122
      %p124 = scmp.ne.s32.totalorder %s115, %s116
      %p125 = scmp.eq.s32.totalorder %s21, 0
      %p126 = por %p124, %p125
      %p127 = scmp.ne.s32.totalorder %s115, %s116
      %p128 = scmp.eq.s32.totalorder %s22, 1
      %p129 = por %p127, %p128
      %p131 = scmp.ne.s32.totalorder %s116, %s130
      %p132 = scmp.eq.s32.totalorder %s22, 0
      %p133 = por %p131, %p132
      %s134 = ssub.s32 %s23, %s35
      %p135 = scmp.eq.s32.totalorder %s134, 0
      %s137 = sadd.s32 %s136, 1
      %s138 = scalar_select %p135, %s136, %s137
      %p141 = pneg %p135
      %p142 = scmp.eq.s32.totalorder %s16, 1
      %p143 = por %p141, %p142
      %p144 = scmp.ne.s32.totalorder %s136, %s139
      %p145 = scmp.eq.s32.totalorder %s16, 0
      %p146 = por %p144, %p145
      %p147 = scmp.ne.s32.totalorder %s136, %s139
      %p148 = scmp.eq.s32.totalorder %s21, 1
      %p149 = por %p147, %p148
      %p150 = scmp.ne.s32.totalorder %s139, %s140
      %p151 = scmp.eq.s32.totalorder %s21, 0
      %p152 = por %p150, %p151
      %p153 = scmp.ne.s32.totalorder %s139, %s140
      %p154 = scmp.eq.s32.totalorder %s22, 1
      %p155 = por %p153, %p154
      %p157 = scmp.ne.s32.totalorder %s140, %s156
      %p158 = scmp.eq.s32.totalorder %s22, 0
      %p159 = por %p157, %p158
      %s161 = sadd.s32 %s160, 1
      %p164 = scmp.eq.s32.totalorder %s16, 1
      %p165 = scmp.ne.s32.totalorder %s160, %s162
      %p166 = scmp.eq.s32.totalorder %s16, 0
      %p167 = por %p165, %p166
      %p168 = scmp.ne.s32.totalorder %s160, %s162
      %p169 = scmp.eq.s32.totalorder %s21, 1
      %p170 = por %p168, %p169
      %p171 = scmp.ne.s32.totalorder %s162, %s163
      %p172 = scmp.eq.s32.totalorder %s21, 0
      %p173 = por %p171, %p172
      %p174 = scmp.ne.s32.totalorder %s162, %s163
      %p175 = scmp.eq.s32.totalorder %s22, 1
      %p176 = por %p174, %p175
      %p178 = scmp.ne.s32.totalorder %s163, %s177
      %p179 = scmp.eq.s32.totalorder %s22, 0
      %p180 = por %p178, %p179
      %s182 = sadd.s32 %s181, 1
      %p185 = scmp.eq.s32.totalorder %s16, 1
      %p186 = scmp.ne.s32.totalorder %s181, %s183
      %p187 = scmp.eq.s32.totalorder %s16, 0
      %p188 = por %p186, %p187
      %p189 = scmp.ne.s32.totalorder %s181, %s183
      %p190 = scmp.eq.s32.totalorder %s21, 1
      %p191 = por %p189, %p190
      %p192 = scmp.ne.s32.totalorder %s183, %s184
      %p193 = scmp.eq.s32.totalorder %s21, 0
      %p194 = por %p192, %p193
      %p195 = scmp.ne.s32.totalorder %s183, %s184
      %p196 = scmp.eq.s32.totalorder %s22, 1
      %p197 = por %p195, %p196
      %p199 = scmp.ne.s32.totalorder %s184, %s198
      %p200 = scmp.eq.s32.totalorder %s22, 0
      %p201 = por %p199, %p200
      %s202 = ssub.s32 %s23, %s35
      %s203 = ssub.s32 %s24, %s31
      %s204 = sor.u32 %s202, %s203
      %p205 = scmp.eq.s32.totalorder %s204, 0
      %s207 = sadd.s32 %s206, 1
      %s208 = scalar_select %p205, %s206, %s207
      %p211 = pneg %p205
      %p212 = scmp.eq.s32.totalorder %s16, 1
      %p213 = por %p211, %p212
      %p214 = scmp.ne.s32.totalorder %s206, %s209
      %p215 = scmp.eq.s32.totalorder %s16, 0
      %p216 = por %p214, %p215
      %p217 = scmp.ne.s32.totalorder %s206, %s209
      %p218 = scmp.eq.s32.totalorder %s21, 1
      %p219 = por %p217, %p218
      %p220 = scmp.ne.s32.totalorder %s209, %s210
      %p221 = scmp.eq.s32.totalorder %s21, 0
      %p222 = por %p220, %p221
      %p223 = scmp.ne.s32.totalorder %s209, %s210
      %p224 = scmp.eq.s32.totalorder %s22, 1
      %p225 = por %p223, %p224
      %p227 = scmp.ne.s32.totalorder %s210, %s226
      %p228 = scmp.eq.s32.totalorder %s22, 0
      %p229 = por %p227, %p228
      %s230 = ssub.s32 %s23, %s35
      %s231 = ssub.s32 %s24, %s31
      %s232 = sor.u32 %s230, %s231
      %p233 = scmp.eq.s32.totalorder %s232, 0
      %s235 = sadd.s32 %s234, 1
      %s236 = scalar_select %p233, %s234, %s235
      %p239 = pneg %p233
      %p240 = scmp.eq.s32.totalorder %s16, 1
      %p241 = por %p239, %p240
      %p242 = scmp.ne.s32.totalorder %s234, %s237
      %p243 = scmp.eq.s32.totalorder %s16, 0
      %p244 = por %p242, %p243
      %p245 = scmp.ne.s32.totalorder %s234, %s237
      %p246 = scmp.eq.s32.totalorder %s21, 1
      %p247 = por %p245, %p246
      %p248 = scmp.ne.s32.totalorder %s237, %s238
      %p249 = scmp.eq.s32.totalorder %s21, 0
      %p250 = por %p248, %p249
      %p251 = scmp.ne.s32.totalorder %s237, %s238
      %p252 = scmp.eq.s32.totalorder %s22, 1
      %p253 = por %p251, %p252
      %p255 = scmp.ne.s32.totalorder %s238, %s254
      %p256 = scmp.eq.s32.totalorder %s22, 0
      %p257 = por %p255, %p256
      %p258 = scmp.le.s32.totalorder 1, %s16
      %p259 = scmp.lt.s32.totalorder %s16, 3
      %p260 = pnand %p258, %p259
      %p261 = pneg %p260
      // Predicated region
      $region9: #{diffusion_forward.1} parent=5 // pred_check
        _
      $region10: #{diffusion_forward.1} parent=5 // pred_check_branch
        %263 = sbr.rel (%p260) target = $region12
      $region11: #{diffusion_forward.1} parent=5 // pred_region
        %s264 = ssub.s32 %s16, 1
        // Predicated region
        $region13: #{diffusion_forward.1} parent=11 // pred_check
          %p265 = pneg %p49
        $region14: #{diffusion_forward.1} parent=11 // pred_check_branch
          %267 = sbr.rel (%p265) target = $region16
        $region15: #{diffusion_forward.1} parent=11 // pred_region
          %s269 = ssub.s32 32, 32
          %270 = vsyncadd [#allocation3], %s269
          %s272 = sshll.u32 %s0, 4
          %s273 = int_to_ptr.vmem [resolvable:$true] %s272
          %275 = dma.vmem_to_smem %s273, 32, [#allocation2], [#allocation3]
        $region16: #{diffusion_forward.1} parent=11 // pred_fallthru
          _
        // Predicated region
        $region17: #{diffusion_forward.1} parent=11 // pred_check
          %p276 = pneg %p126
        $region18: #{diffusion_forward.1} parent=11 // pred_check_branch
          %278 = sbr.rel (%p276) target = $region20
        $region19: #{diffusion_forward.1} parent=11 // pred_region
          _
        $region20: #{diffusion_forward.1} parent=11 // pred_fallthru
          _
        // Predicated region
        $region21: #{diffusion_forward.1} parent=11 // pred_check
          %p279 = pneg %p173
        $region22: #{diffusion_forward.1} parent=11 // pred_check_branch
          %281 = sbr.rel (%p279) target = $region24
        $region23: #{diffusion_forward.1} parent=11 // pred_region
          _
        $region24: #{diffusion_forward.1} parent=11 // pred_fallthru
          _
        // Predicated region
        $region25: #{diffusion_forward.1} parent=11 // pred_check
          %p282 = pneg %p194
        $region26: #{diffusion_forward.1} parent=11 // pred_check_branch
          %284 = sbr.rel (%p282) target = $region28
        $region27: #{diffusion_forward.1} parent=11 // pred_region
          _
        $region28: #{diffusion_forward.1} parent=11 // pred_fallthru
          _
      $region12: #{diffusion_forward.1} parent=5 // pred_fallthru
        _
      %p285 = scmp.lt.s32.totalorder %s16, 2
      // Predicated region
      $region29: #{diffusion_forward.1} parent=5 // pred_check
        %p286 = pneg %p285
      $region30: #{diffusion_forward.1} parent=5 // pred_check_branch
        %288 = sbr.rel (%p286) target = $region32
      $region31: #{diffusion_forward.1} parent=5 // pred_region
        // Predicated region
        $region33: #{diffusion_forward.1} parent=31 // pred_check
          %p289 = pneg %p71
        $region34: #{diffusion_forward.1} parent=31 // pred_check_branch
          %291 = sbr.rel (%p289) target = $region36
        $region35: #{diffusion_forward.1} parent=31 // pred_region
          %s292 = smul.u32 2, %s24
          %p293 = scmp.lt.s32.totalorder %s23, 1
          %s294 = scalar_select %p293, %s23, 1
          %p295 = scmp.lt.s32.totalorder %s292, 1
          %s296 = scalar_select %p295, %s292, 1
          %s297 = smul.addr %s294, 2
          %s298 = sadd.s32 %s296, %s297
          %s299 = smul.addr %s298, 2
          %s300 = scalar_lea.vmem %s1, %s299
          %s301 = smul.u32 2, %s24
        $region36: #{diffusion_forward.1} parent=31 // pred_fallthru
          _
        // Predicated region
        $region37: #{diffusion_forward.1} parent=31 // pred_check
          %p302 = pneg %p99
        $region38: #{diffusion_forward.1} parent=31 // pred_check_branch
          %304 = sbr.rel (%p302) target = $region40
        $region39: #{diffusion_forward.1} parent=31 // pred_region
          %s305 = smul.u32 2, %s24
          %p306 = scmp.lt.s32.totalorder %s23, 1
          %s307 = scalar_select %p306, %s23, 1
          %p308 = scmp.lt.s32.totalorder %s305, 1
          %s309 = scalar_select %p308, %s305, 1
          %s310 = smul.addr %s307, 2
          %s311 = sadd.s32 %s309, %s310
          %s312 = smul.addr %s311, 2
          %s313 = scalar_lea.vmem %s2, %s312
          %s314 = smul.u32 2, %s24
        $region40: #{diffusion_forward.1} parent=31 // pred_fallthru
          _
        // Predicated region
        $region41: #{diffusion_forward.1} parent=31 // pred_check
          %p315 = pneg %p146
        $region42: #{diffusion_forward.1} parent=31 // pred_check_branch
          %317 = sbr.rel (%p315) target = $region44
        $region43: #{diffusion_forward.1} parent=31 // pred_region
          %p318 = scmp.lt.s32.totalorder %s23, 1
          %s319 = scalar_select %p318, %s23, 1
          %s320 = smul.addr %s319, 4
          %s321 = smul.addr %s320, 8
          %s322 = scalar_lea.vmem %s4, %s321
        $region44: #{diffusion_forward.1} parent=31 // pred_fallthru
          _
      $region32: #{diffusion_forward.1} parent=5 // pred_fallthru
        _
      %p323 = scmp.le.s32.totalorder 1, %s16
      %p324 = scmp.lt.s32.totalorder %s16, 3
      %p325 = pnand %p323, %p324
      %p326 = pneg %p325
      // Predicated region
      $region45: #{diffusion_forward.1} parent=5 // pred_check
        _
      $region46: #{diffusion_forward.1} parent=5 // pred_check_branch
        %328 = sbr.rel (%p325) target = $region48
      $region47: #{diffusion_forward.1} parent=5 // pred_region
        %s329 = ssub.s32 %s16, 1
        // Predicated region
        $region49: #{diffusion_forward.1} parent=47 // pred_check
          %p330 = pneg %p49
        $region50: #{diffusion_forward.1} parent=47 // pred_check_branch
          %332 = sbr.rel (%p330) target = $region52
        $region51: #{diffusion_forward.1} parent=47 // pred_region
          %333 = dma.done [#allocation3], 32
        $region52: #{diffusion_forward.1} parent=47 // pred_fallthru
          _
        %334 = sfence
        %p335 = pneg %p49
        %p336 = pneg %p46
        %s337 = smul.u32 2, %s26
        %p338 = scmp.lt.s32.totalorder %s25, 1
        %s339 = scalar_select %p338, %s25, 1
        %p340 = scmp.lt.s32.totalorder %s337, 1
        %s341 = scalar_select %p340, %s337, 1
        %s342 = smul.addr %s339, 2
        %s343 = sadd.s32 %s341, %s342
        %s344 = smul.addr %s343, 2
        %s345 = scalar_lea.vmem %s1, %s344
        %p346 = pneg %p77
        %p347 = pneg %p74
        %s348 = smul.u32 2, %s26
        %p349 = scmp.lt.s32.totalorder %s25, 1
        %s350 = scalar_select %p349, %s25, 1
        %p351 = scmp.lt.s32.totalorder %s348, 1
        %s352 = scalar_select %p351, %s348, 1
        %s353 = smul.addr %s350, 2
        %s354 = sadd.s32 %s352, %s353
        %s355 = smul.addr %s354, 2
        %s356 = scalar_lea.vmem %s2, %s355
        %p357 = pneg %p105
        %p358 = pneg %p102
        %p359 = pneg %p126
        %p360 = pneg %p123
        %p361 = scmp.lt.s32.totalorder %s25, 1
        %s362 = scalar_select %p361, %s25, 1
        %s363 = smul.addr %s362, 4
        %s364 = smul.addr %s363, 8
        %s365 = scalar_lea.vmem %s4, %s364
        %p366 = pneg %p152
        %p367 = pneg %p149
        %p368 = pneg %p173
        %p369 = pneg %p170
        %p370 = pneg %p194
        %p371 = pneg %p191
        %p372 = pneg %p222
        %p373 = pneg %p219
        %s374 = smul.u32 2, %s26
        %p375 = scmp.lt.s32.totalorder %s25, 1
        %s376 = scalar_select %p375, %s25, 1
        %p377 = scmp.lt.s32.totalorder %s374, 1
        %s378 = scalar_select %p377, %s374, 1
        %s379 = smul.addr %s376, 2
        %s380 = sadd.s32 %s378, %s379
        %s381 = smul.addr %s380, 2
        %s382 = scalar_lea.vmem %s7, %s381
        %p383 = pneg %p250
        %p384 = pneg %p247
        %p385 = scmp.lt.s32.totalorder %s25, 1
        %s386 = scalar_select %p385, %s25, 1
        %p387 = scmp.lt.s32.totalorder %s26, 0
        %s388 = scalar_select %p387, %s26, 0
        %s389 = sadd.s32 %s388, %s386
        %s390 = scalar_lea.vmem %s8, %s389
        %s391 = smul.u32 2, %s26
        %p392 = scmp.lt.s32.totalorder %s25, 1
        %s393 = scalar_select %p392, %s25, 1
        %p394 = scmp.lt.s32.totalorder %s391, 1
        %s395 = scalar_select %p394, %s391, 1
        %s396 = smul.addr %s393, 2
        %s397 = sadd.s32 %s395, %s396
        %s398 = smul.addr %s397, 2
        %s399 = scalar_lea.vmem %s1, %s398
        %s400 = smul.u32 2, %s26
        %s401 = smul.u32 2, %s26
        %p402 = scmp.lt.s32.totalorder %s25, 1
        %s403 = scalar_select %p402, %s25, 1
        %p404 = scmp.lt.s32.totalorder %s401, 1
        %s405 = scalar_select %p404, %s401, 1
        %s406 = smul.addr %s403, 2
        %s407 = sadd.s32 %s405, %s406
        %s408 = smul.addr %s407, 2
        %s409 = scalar_lea.vmem %s2, %s408
        %s410 = smul.u32 2, %s26
        %p411 = scmp.lt.s32.totalorder %s25, 1
        %s412 = scalar_select %p411, %s25, 1
        %s413 = smul.addr %s412, 4
        %s414 = smul.addr %s413, 8
        %s415 = scalar_lea.vmem %s4, %s414
        %s416 = smul.u32 2, %s26
        %p417 = scmp.lt.s32.totalorder %s25, 1
        %s418 = scalar_select %p417, %s25, 1
        %p419 = scmp.lt.s32.totalorder %s416, 1
        %s420 = scalar_select %p419, %s416, 1
        %s421 = smul.addr %s418, 2
        %s422 = sadd.s32 %s420, %s421
        %s423 = smul.addr %s422, 2
        %s424 = scalar_lea.vmem %s7, %s423
        %s425 = smul.u32 2, %s26
        %p426 = scmp.lt.s32.totalorder %s25, 1
        %s427 = scalar_select %p426, %s25, 1
        %p428 = scmp.lt.s32.totalorder %s26, 0
        %s429 = scalar_select %p428, %s26, 0
        %s430 = sadd.s32 %s429, %s427
        %s431 = scalar_lea.vmem %s8, %s430
        %s432 = smul.u32 %s25, 128
        %s433 = sld [smem:[#allocation2 + %s432]]
        %s434 = sadd.s32 %s432, 1
        %s435 = sld [smem:[#allocation2 + %s434]]
        %v436 = vld [vmem:[%s399] sm:$0xf]
        %v437 = vunpack.c.l.bf16 %v436
        %v438 = vld [vmem:[%s409] sm:$0xf]
        %v439 = vunpack.c.l.bf16 %v438
        %v440 = vstv %s433
        %v441 = vmul.f32 %v440, %v437
        %v442 = vstv %s435
        %v443 = vmul.f32 %v442, %v439
        %v444 = vadd.f32 %v441, %v443
        %v445 = vld [vmem:[%s3] sm:$0xff]
        %v446 = vld [vmem:[%s3 + $0x8] sm:$0xff]
        %v447 = vld [vmem:[%s3 + $0x10] sm:$0xff]
        %v448 = vld [vmem:[%s3 + $0x18] sm:$0xff]
        %v449 = vld [vmem:[%s415] sm:$0xff]
        %v450 = vld [vmem:[%s415 + $0x8] sm:$0xff]
        %v451 = vld [vmem:[%s415 + $0x10] sm:$0xff]
        %v452 = vld [vmem:[%s415 + $0x18] sm:$0xff]
        %454 = vset.pattern.permute.xlu0 0
        %455 = vperm.xlu0 %454, %v449
        %v456 = vpop.permute.xlu0 %455
        %459 = vset.pattern.permute.xlu0 0
        %460 = vperm.xlu0 %459, %v450
        %v461 = vpop.permute.xlu0 %460
        %464 = vset.pattern.permute.xlu0 0
        %465 = vperm.xlu0 %464, %v451
        %v466 = vpop.permute.xlu0 %465
        %469 = vset.pattern.permute.xlu0 0
        %470 = vperm.xlu0 %469, %v452
        %v471 = vpop.permute.xlu0 %470
        %v474 = vcombine.high %v444, %v444
        %vm475 = vcmask 31744
        %v477 = vsel %vm475, %v445, 0
        %v480 = vsel %vm475, %v446, 0
        %v483 = vsel %vm475, %v447, 0
        %v486 = vsel %vm475, %v448, 0
        %vm488 = vcmask 1043456
        %v489 = vsel %vm488, %v444, 0
        %v491 = vsel %vm488, %v474, 0
        %493 = vmatprep.subr.mxu0 0.0
        %494 = vmatpush1.msra.mxu0 0.0
        %495 = vmatprep.subr.mxu0 0.0
        %496 = vmatpush1.msra.mxu0 0.0
        %497 = vmatprep.subr.mxu0 0.0
        %498 = vmatpush1.msra.mxu0 0.0
        %499 = vmatprep.subr.mxu0 0.0
        %500 = vmatpush1.msra.mxu0 0.0
        %501 = vmatprep.subr.mxu0 0.0
        %502 = vmatpush1.msra.mxu0 0.0
        %503 = vmatprep.subr.mxu0 0.0
        %504 = vmatpush1.msra.mxu0 0.0
        %505 = vmatprep.subr.mxu0 0.0
        %506 = vmatpush1.msra.mxu0 0.0
        %507 = vmatprep.subr.mxu0 0.0
        %508 = vmatpush1.msra.mxu0 0.0
        %509 = vmatprep.subr.mxu0 0.0
        %510 = vmatpush1.msra.mxu0 0.0
        %511 = vmatprep.subr.mxu0 0.0
        %512 = vmatpush1.msra.mxu0 0.0
        %513 = vmatprep.subr.mxu0 0.0
        %514 = vmatpush1.msra.mxu0 0.0
        %515 = vmatprep.subr.mxu0 0.0
        %516 = vmatpush1.msra.mxu0 0.0
        %517 = vmatprep.subr.mxu0 0.0
        %518 = vmatpush1.msra.mxu0 0.0
        %519 = vmatprep.subr.mxu0 0.0
        %520 = vmatpush1.msra.mxu0 0.0
        %521 = vmatprep.subr.mxu0 0.0
        %522 = vmatpush1.msra.mxu0 0.0
        %523 = vmatprep.subr.mxu0 %v491
        %524 = vmatpush1.msra.mxu0 %v489
        %525 = vmatprep.subr.mxu0 0.0
        %526 = vmatpush2.msra.mxu0 0.0
        %527 = vmatprep.subr.mxu0 0.0
        %528 = vmatpush2.msra.mxu0 0.0
        %529 = vmatprep.subr.mxu0 0.0
        %530 = vmatpush2.msra.mxu0 0.0
        %531 = vmatprep.subr.mxu0 0.0
        %532 = vmatpush2.msra.mxu0 0.0
        %533 = vmatprep.subr.mxu0 0.0
        %534 = vmatpush2.msra.mxu0 0.0
        %535 = vmatprep.subr.mxu0 0.0
        %536 = vmatpush2.msra.mxu0 0.0
        %537 = vmatprep.subr.mxu0 0.0
        %538 = vmatpush2.msra.mxu0 0.0
        %539 = vmatprep.subr.mxu0 0.0
        %540 = vmatpush2.msra.mxu0 0.0
        %541 = vmatprep.subr.mxu0 0.0
        %542 = vmatpush2.msra.mxu0 0.0
        %543 = vmatprep.subr.mxu0 0.0
        %544 = vmatpush2.msra.mxu0 0.0
        %545 = vmatprep.subr.mxu0 0.0
        %546 = vmatpush2.msra.mxu0 0.0
        %547 = vmatprep.subr.mxu0 0.0
        %548 = vmatpush2.msra.mxu0 0.0
        %549 = vmatprep.subr.mxu0 0.0
        %550 = vmatpush2.msra.mxu0 0.0
        %551 = vmatprep.subr.mxu0 0.0
        %552 = vmatpush2.msra.mxu0 0.0
        %553 = vmatprep.subr.mxu0 0.0
        %554 = vmatpush2.msra.mxu0 0.0
        %555 = vmatprep.subr.mxu0 0.0
        %556 = vmatpush2.msra.mxu0 0.0
        %557 = vmatprep.mubr.f32.mxu0 0.0
        %558 = vmatmul.mubr.f32.gmra.mxu0 %v477
        %v559 = vpop.f32.mrf.mxu0
        %v560 = vadd.f32 %v456, %v559
        %v561 = vpop.f32.mrf.mxu0
        %v562 = vadd.f32 %v456, %v561
        %563 = vmatprep.mubr.f32.mxu0 0.0
        %564 = vmatmul.mubr.f32.gmra.mxu0 %v480
        %v565 = vpop.f32.mrf.mxu0
        %v566 = vadd.f32 %v461, %v565
        %v567 = vpop.f32.mrf.mxu0
        %v568 = vadd.f32 %v461, %v567
        %569 = vmatprep.mubr.f32.mxu0 0.0
        %570 = vmatmul.mubr.f32.gmra.mxu0 %v483
        %v571 = vpop.f32.mrf.mxu0
        %v572 = vadd.f32 %v466, %v571
        %v573 = vpop.f32.mrf.mxu0
        %v574 = vadd.f32 %v466, %v573
        %575 = vmatprep.mubr.f32.mxu0 0.0
        %576 = vmatmul.mubr.f32.gmra.mxu0 %v486
        %v577 = vpop.f32.mrf.mxu0
        %v578 = vadd.f32 %v471, %v577
        %v579 = vpop.f32.mrf.mxu0
        %v580 = vadd.f32 %v471, %v579
        %581 = vdwg.mxu0
        %v582 = vmax.f32 %v560, 0.0
        %v583 = vmax.f32 %v562, 0.0
        %v584 = vmax.f32 %v566, 0.0
        %v585 = vmax.f32 %v568, 0.0
        %v586 = vmax.f32 %v572, 0.0
        %v587 = vmax.f32 %v574, 0.0
        %v588 = vmax.f32 %v578, 0.0
        %v589 = vmax.f32 %v580, 0.0
        %v590 = vld [vmem:[%s5] sm:$0xf]
        %v591 = vld [vmem:[%s6] sm:$0xf]
        %593 = vset.pattern.permute.xlu0 0
        %594 = vperm.xlu0 %593, %v591
        %v595 = vpop.permute.xlu0 %594
        %vm597 = vcmask 261120
        %v599 = vsel %vm597, %v590, 0
        %601 = vmatprep.subr.mxu0 0.0
        %602 = vmatpush1.msra.mxu0 0.0
        %603 = vmatprep.subr.mxu0 0.0
        %604 = vmatpush1.msra.mxu0 0.0
        %605 = vmatprep.subr.mxu0 0.0
        %606 = vmatpush1.msra.mxu0 0.0
        %607 = vmatprep.subr.mxu0 0.0
        %608 = vmatpush1.msra.mxu0 0.0
        %609 = vmatprep.subr.mxu0 0.0
        %610 = vmatpush1.msra.mxu0 0.0
        %611 = vmatprep.subr.mxu0 0.0
        %612 = vmatpush1.msra.mxu0 0.0
        %613 = vmatprep.subr.mxu0 0.0
        %614 = vmatpush1.msra.mxu0 0.0
        %615 = vmatprep.subr.mxu0 0.0
        %616 = vmatpush1.msra.mxu0 0.0
        %617 = vmatprep.subr.mxu0 0.0
        %618 = vmatpush1.msra.mxu0 0.0
        %619 = vmatprep.subr.mxu0 0.0
        %620 = vmatpush1.msra.mxu0 0.0
        %621 = vmatprep.subr.mxu0 0.0
        %622 = vmatpush1.msra.mxu0 0.0
        %623 = vmatprep.subr.mxu0 0.0
        %624 = vmatpush1.msra.mxu0 0.0
        %625 = vmatprep.subr.mxu0 %v589
        %626 = vmatpush1.msra.mxu0 %v588
        %627 = vmatprep.subr.mxu0 %v587
        %628 = vmatpush1.msra.mxu0 %v586
        %629 = vmatprep.subr.mxu0 %v585
        %630 = vmatpush1.msra.mxu0 %v584
        %631 = vmatprep.subr.mxu0 %v583
        %632 = vmatpush1.msra.mxu0 %v582
        %633 = vmatprep.subr.mxu0 0.0
        %634 = vmatpush2.msra.mxu0 0.0
        %635 = vmatprep.subr.mxu0 0.0
        %636 = vmatpush2.msra.mxu0 0.0
        %637 = vmatprep.subr.mxu0 0.0
        %638 = vmatpush2.msra.mxu0 0.0
        %639 = vmatprep.subr.mxu0 0.0
        %640 = vmatpush2.msra.mxu0 0.0
        %641 = vmatprep.subr.mxu0 0.0
        %642 = vmatpush2.msra.mxu0 0.0
        %643 = vmatprep.subr.mxu0 0.0
        %644 = vmatpush2.msra.mxu0 0.0
        %645 = vmatprep.subr.mxu0 0.0
        %646 = vmatpush2.msra.mxu0 0.0
        %647 = vmatprep.subr.mxu0 0.0
        %648 = vmatpush2.msra.mxu0 0.0
        %649 = vmatprep.subr.mxu0 0.0
        %650 = vmatpush2.msra.mxu0 0.0
        %651 = vmatprep.subr.mxu0 0.0
        %652 = vmatpush2.msra.mxu0 0.0
        %653 = vmatprep.subr.mxu0 0.0
        %654 = vmatpush2.msra.mxu0 0.0
        %655 = vmatprep.subr.mxu0 0.0
        %656 = vmatpush2.msra.mxu0 0.0
        %657 = vmatprep.subr.mxu0 0.0
        %658 = vmatpush2.msra.mxu0 0.0
        %659 = vmatprep.subr.mxu0 0.0
        %660 = vmatpush2.msra.mxu0 0.0
        %661 = vmatprep.subr.mxu0 0.0
        %662 = vmatpush2.msra.mxu0 0.0
        %663 = vmatprep.subr.mxu0 0.0
        %664 = vmatpush2.msra.mxu0 0.0
        %665 = vmatprep.mubr.f32.mxu0 0.0
        %666 = vmatmul.mubr.f32.gmra.mxu0 %v599
        %v667 = vpop.f32.mrf.mxu0
        %v668 = vadd.f32 %v595, %v667
        %v669 = vpop.f32.mrf.mxu0
        %v670 = vadd.f32 %v595, %v669
        %671 = vdwg.mxu0
        %v672 = vpack.c.bf16 %v668, %v668
        %v673 = vpack.c.bf16 %v670, %v670
        %v676 = vcombine.low %v672, %v673
        %v678 = vunpack.c.l.s4 1983009808
        %v679 = vunpack.c.0.s8 %v678
        %v680 = vlaneseq
        %v681 = vshrl.u32 %v680, 7
        %v682 = vsub.s32 %v679, %v681
        %v683 = vrot.slane %v676, %v682
        %685 = vst [vmem:[%s424] sm:$0xf] %v683
        %v687 = vcombine.high %v439, %v439
        %v689 = vsub.f32 %v668, %v439
        %v690 = vsub.f32 %v670, %v687
        %v691 = vmul.f32 %v689, %v689
        %v692 = vmul.f32 %v690, %v690
        %v693 = vsel %vm488, %v691, 0.0
        %v694 = vrot.slane %v693, 4
        %v695 = vadd.f32 %v693, %v694
        %v696 = vrot.slane %v695, 2
        %v697 = vadd.f32 %v695, %v696
        %v698 = vrot.slane %v697, 1
        %v699 = vadd.f32 %v697, %v698
        %v700 = vsel %vm488, %v692, 0.0
        %v701 = vrot.slane %v700, 4
        %v702 = vadd.f32 %v700, %v701
        %v703 = vrot.slane %v702, 2
        %v704 = vadd.f32 %v702, %v703
        %v705 = vrot.slane %v704, 1
        %v706 = vadd.f32 %v704, %v705
        %v707 = vadd.f32 %v699, %v706
        %708 = vadd.xlane.f32.xlu0 %v707
        %v709 = vpop.xlane.xlu0 %708
        %vm710 = vcmask 0
        %711 = vst.msk [vmem:[%s431] sm:$0x1] %vm710, %v709
        %s712 = smul.u32 2, %s26
        %p713 = scmp.lt.s32.totalorder %s25, 1
        %s714 = scalar_select %p713, %s25, 1
        %p715 = scmp.lt.s32.totalorder %s712, 1
        %s716 = scalar_select %p715, %s712, 1
        %s717 = smul.addr %s714, 2
        %s718 = sadd.s32 %s716, %s717
        %s719 = smul.addr %s718, 2
        %s720 = scalar_lea.vmem %s7, %s719
        %p721 = scmp.lt.s32.totalorder %s25, 1
        %s722 = scalar_select %p721, %s25, 1
        %p723 = scmp.lt.s32.totalorder %s26, 0
        %s724 = scalar_select %p723, %s26, 0
        %s725 = sadd.s32 %s724, %s722
        %s726 = scalar_lea.vmem %s8, %s725
        // Predicated region
        $region53: #{diffusion_forward.1} parent=47 // pred_check
          %p727 = pneg %p219
        $region54: #{diffusion_forward.1} parent=47 // pred_check_branch
          %729 = sbr.rel (%p727) target = $region56
        $region55: #{diffusion_forward.1} parent=47 // pred_region
          %s730 = smul.u32 2, %s26
        $region56: #{diffusion_forward.1} parent=47 // pred_fallthru
          _
        // Predicated region
        $region57: #{diffusion_forward.1} parent=47 // pred_check
          %p731 = pneg %p247
        $region58: #{diffusion_forward.1} parent=47 // pred_check_branch
          %733 = sbr.rel (%p731) target = $region60
        $region59: #{diffusion_forward.1} parent=47 // pred_region
          _
        $region60: #{diffusion_forward.1} parent=47 // pred_fallthru
          _
      $region48: #{diffusion_forward.1} parent=5 // pred_fallthru
        _
      %p734 = scmp.le.s32.totalorder 2, %s16
      // Predicated region
      $region61: #{diffusion_forward.1} parent=5 // pred_check
        %p735 = pneg %p734
      $region62: #{diffusion_forward.1} parent=5 // pred_check_branch
        %737 = sbr.rel (%p735) target = $region64
      $region63: #{diffusion_forward.1} parent=5 // pred_region
        %s738 = ssub.s32 %s16, 2
        // Predicated region
        $region65: #{diffusion_forward.1} parent=63 // pred_check
          %p739 = pneg %p225
        $region66: #{diffusion_forward.1} parent=63 // pred_check_branch
          %741 = sbr.rel (%p739) target = $region68
        $region67: #{diffusion_forward.1} parent=63 // pred_region
          %s742 = smul.u32 2, %s28
          %p743 = scmp.lt.s32.totalorder %s27, 1
          %s744 = scalar_select %p743, %s27, 1
          %p745 = scmp.lt.s32.totalorder %s742, 1
          %s746 = scalar_select %p745, %s742, 1
          %s747 = smul.addr %s744, 2
          %s748 = sadd.s32 %s746, %s747
          %s749 = smul.addr %s748, 2
          %s750 = scalar_lea.vmem %s7, %s749
        $region68: #{diffusion_forward.1} parent=63 // pred_fallthru
          _
        // Predicated region
        $region69: #{diffusion_forward.1} parent=63 // pred_check
          %p751 = pneg %p253
        $region70: #{diffusion_forward.1} parent=63 // pred_check_branch
          %753 = sbr.rel (%p751) target = $region72
        $region71: #{diffusion_forward.1} parent=63 // pred_region
          %p754 = scmp.lt.s32.totalorder %s27, 1
          %s755 = scalar_select %p754, %s27, 1
          %p756 = scmp.lt.s32.totalorder %s28, 0
          %s757 = scalar_select %p756, %s28, 0
          %s758 = sadd.s32 %s757, %s755
          %s759 = scalar_lea.vmem %s8, %s758
        $region72: #{diffusion_forward.1} parent=63 // pred_fallthru
          _
      $region64: #{diffusion_forward.1} parent=5 // pred_fallthru
        _
    $region6: #{diffusion_forward.1} parent=1 // loop_footer
      %s20 = sadd.s32 1, %s16
    $region7: #{diffusion_forward.1} parent=1 // loop_footer_branch
      %15 = sbr.rel target = $region3
    $region8: #{diffusion_forward.1} parent=1 // loop_exit
      _
    %760 = vsyncpa [#allocation3], 1
    %s761 = scalar_lea.sflag [#allocation3], 1
    %762 = vsyncpa %s761, 1

</llo_original>
